<compile_context>
chip_gen: v7x
topology: tpu7x:2x2x1
jax: 0.10.0
libtpu: 0.0.40
codegen_flags: <defaults>
</compile_context>

<pallas_src>
import math

import jax
import jax.numpy as jnp
from jax.experimental import pallas as pl


def _round_up(n, m):
    return ((n + m - 1) // m) * m


def _hypernet_kernel(x_ref, params_ref, out_ref):
    """out = x @ W + bias  — one MXU matmul + one VPU add, all lane-dense.

    x_ref      : (1, K_pad)         padded latent vector (zeros past z_dim)
    params_ref : (K_pad + 8, N_pad) rows [0:K_pad]  = combined weight [Wc | B] (zero padded)
                                    row  [K_pad]    = combined bias   [bc | 0]
                                    rows [K_pad+1:] = zeros (sublane alignment)
    out_ref    : (1, N_pad)         lanes [0:flat]            = flattened hyper-weight w
                                    lanes [flat:flat+out_dim] = hyper-bias b
    """
    k_pad = x_ref.shape[1]
    w = params_ref[:k_pad, :]                       # (K_pad, N_pad) static, 8-aligned slice
    bias = params_ref[k_pad:k_pad + 1, :]           # (1, N_pad)
    out_ref[...] = (
        jnp.dot(x_ref[...], w, preferred_element_type=jnp.float32) + bias
    )


def prepare_hypernetwork_params(w1, b1, w2, b2, w3, b3, b_proj):
    """One-time parameter prep: collapse the affine chain, merge the B projection,
    zero-pad to lane/sublane-dense sizes, and pack everything into a single slab."""
    z_dim, input_dim = w1.shape
    output_dim = b_proj.shape[1]
    flat_dim = w3.shape[1]
    assert flat_dim == input_dim * output_dim

    f32 = jnp.float32
    hp = jax.lax.Precision.HIGHEST
    w1, b1, w2, b2, w3, b3, b_proj = (
        jnp.asarray(a, f32) for a in (w1, b1, w2, b2, w3, b3, b_proj)
    )

    # ((x@W1 + b1)@W2 + b2)@W3 + b3  ==  x @ (W1@W2@W3) + ((b1@W2 + b2)@W3 + b3)
    wc = jnp.dot(jnp.dot(w1, w2, precision=hp), w3, precision=hp)              # (z, flat)
    bc = jnp.dot(jnp.dot(b1, w2, precision=hp) + b2, w3, precision=hp) + b3    # (flat,)

    # Merge the independent x @ B projection into the same matmul (extra lanes, zero bias).
    w_cat = jnp.concatenate([wc, b_proj], axis=1)                              # (z, flat+out)
    b_cat = jnp.concatenate([bc, jnp.zeros((output_dim,), f32)])               # (flat+out,)

    n = flat_dim + output_dim
    k_pad = _round_up(z_dim, 128)   # lane-dense x load / MXU contraction width
    n_pad = _round_up(n, 128)       # lane-dense output row

    slab = jnp.zeros((k_pad + 8, n_pad), f32)
    slab = slab.at[:z_dim, :n].set(w_cat)
    slab = slab.at[k_pad, :n].set(b_cat)

    return {
        "slab": slab,
        "z_dim": z_dim,
        "input_dim": input_dim,
        "output_dim": output_dim,
        "flat_dim": flat_dim,
        "k_pad": k_pad,
        "n_pad": n_pad,
    }


def hypernetwork_forward(x, params):
    """Pallas-fused HyperNetwork forward using prepared params.

    x : (z_dim,) or (1, z_dim)
    returns (w, b) with w: (output_dim, input_dim), b: (output_dim,) (or (1, output_dim) if x is 2D)
    """
    z_dim = params["z_dim"]
    input_dim = params["input_dim"]
    output_dim = params["output_dim"]
    flat_dim = params["flat_dim"]
    k_pad = params["k_pad"]
    n_pad = params["n_pad"]
    slab = params["slab"]

    x_was_1d = jnp.ndim(x) == 1
    x2 = jnp.asarray(x, jnp.float32).reshape(1, z_dim)
    x_pad = jnp.zeros((1, k_pad), jnp.float32).at[:, :z_dim].set(x2)

    cost = pl.CostEstimate(
        flops=2 * k_pad * n_pad,                       # single (1,K)@(K,N) matmul
        transcendentals=0,
        bytes_accessed=4 * (k_pad + slab.size + n_pad),
    )

    out = pl.pallas_call(
        _hypernet_kernel,
        out_shape=jax.ShapeDtypeStruct((1, n_pad), jnp.float32),
        grid=(),  # single invocation; everything (<200 KiB) resident in VMEM
        in_specs=[
            pl.BlockSpec(x_pad.shape, lambda: (0, 0)),
            pl.BlockSpec(slab.shape, lambda: (0, 0)),
        ],
        out_specs=pl.BlockSpec((1, n_pad), lambda: (0, 0)),
        cost_estimate=cost,
    )(x_pad, slab)

    # torch's .view(output_dim, input_dim): free layout op done outside the kernel.
    w = out[0, :flat_dim].reshape(output_dim, input_dim)
    b_row = out[:, flat_dim:flat_dim + output_dim]
    b = b_row[0] if x_was_1d else b_row
    return w, b


def _reference(x, w1, b1, w2, b2, w3, b3, b_proj, input_dim, output_dim):
    hp = jax.lax.Precision.HIGHEST
    h1 = jnp.dot(x, w1, precision=hp) + b1
    h2 = jnp.dot(h1, w2, precision=hp) + b2
    h3 = jnp.dot(h2, w3, precision=hp) + b3
    w = h3.reshape(output_dim, input_dim)
    b = jnp.dot(x, b_proj, precision=hp)
    return w, b


def _kaiming_uniform(key, shape, fan_in):
    # same scale as torch's kaiming_uniform_(a=sqrt(5)): bound = 1/sqrt(fan_in)
    bound = 1.0 / math.sqrt(fan_in)
    return jax.random.uniform(key, shape, dtype=jnp.float32, minval=-bound, maxval=bound)


if __name__ == "__main__":
    key = jax.random.PRNGKey(0)

    # Small shapes consistent with the module; input_dim*output_dim = 128 keeps
    # the flat-w portion of the fused output exactly one lane row wide.
    z_dim, input_dim, output_dim = 64, 32, 4

    ks = jax.random.split(key, 8)
    w1 = _kaiming_uniform(ks[0], (z_dim, input_dim), input_dim)
    b1 = _kaiming_uniform(ks[1], (input_dim,), input_dim)
    w2 = _kaiming_uniform(ks[2], (input_dim, input_dim + output_dim), input_dim + output_dim)
    b2 = _kaiming_uniform(ks[3], (input_dim + output_dim,), input_dim + output_dim)
    w3 = _kaiming_uniform(ks[4], (input_dim + output_dim, input_dim * output_dim),
                          input_dim * output_dim)
    b3 = _kaiming_uniform(ks[5], (input_dim * output_dim,), input_dim * output_dim)
    b_proj = _kaiming_uniform(ks[6], (z_dim, output_dim), output_dim)
    x = jax.random.normal(ks[7], (z_dim,), dtype=jnp.float32)

    # One-time parameter prep (chain collapse, merge, pad, pack); reused across calls.
    params = prepare_hypernetwork_params(w1, b1, w2, b2, w3, b3, b_proj)
    params = jax.block_until_ready(params)

    w, b = hypernetwork_forward(x, params)
    w, b = jax.block_until_ready((w, b))

    w_ref, b_ref = _reference(x, w1, b1, w2, b2, w3, b3, b_proj, input_dim, output_dim)
    assert w.shape == (output_dim, input_dim)
    assert b.shape == (output_dim,)
    # Tolerance slightly relaxed vs 1e-4/1e-4: chain collapse changes f32 rounding order.
    assert jnp.allclose(w, w_ref, atol=2e-4, rtol=2e-4), "w mismatch vs JAX reference"
    assert jnp.allclose(b, b_ref, atol=2e-4, rtol=2e-4), "b mismatch vs JAX reference"

    print("KERNEL_OK")
</pallas_src>

<mosaic_0001>
module attributes {stable_mosaic.version = 11 : i64} {
  func.func @_hypernet_kernel(%arg0: memref<1x128xf32, #tpu.memory_space<vmem>>, %arg1: memref<136x256xf32, #tpu.memory_space<vmem>>, %arg2: memref<1x256xf32, #tpu.memory_space<vmem>>) attributes {dimension_semantics = [], scalar_prefetch = 0 : i64, scratch_operands = 0 : i64, tpu.core_type = #tpu.core_type<tc>} {
    %c0 = arith.constant 0 : index
    %c0_0 = arith.constant 0 : index
    %0 = vector.load %arg1[%c0, %c0_0] : memref<136x256xf32, #tpu.memory_space<vmem>>, vector<128x256xf32>
    %c128 = arith.constant 128 : index
    %c0_1 = arith.constant 0 : index
    %1 = vector.load %arg1[%c128, %c0_1] : memref<136x256xf32, #tpu.memory_space<vmem>>, vector<1x256xf32>
    %c0_2 = arith.constant 0 : index
    %c0_3 = arith.constant 0 : index
    %2 = vector.load %arg0[%c0_2, %c0_3] : memref<1x128xf32, #tpu.memory_space<vmem>>, vector<1x128xf32>
    %cst = arith.constant dense<0.000000e+00> : vector<1x256xf32>
    %3 = tpu.matmul %2, %0, %cst {dimension_numbers = #tpu.dot_dimension_numbers<[1], [0], [0], [1], [0, 0, 1, 1], [], []>} : vector<1x128xf32>, vector<128x256xf32>, vector<1x256xf32> -> vector<1x256xf32>
    %4 = arith.addf %3, %1 : vector<1x256xf32>
    %c0_4 = arith.constant 0 : index
    %c0_5 = arith.constant 0 : index
    %5 = vector.load %arg2[%c0_4, %c0_5] : memref<1x256xf32, #tpu.memory_space<vmem>>, vector<1x256xf32>
    tpu.vector_store %arg2[%c0_4, %c0_5], %4 {strides = array<i32>} : memref<1x256xf32, #tpu.memory_space<vmem>>, vector<1x256xf32>,
    return
  }
}

</mosaic_0001>

<llo_original>
// kernel: tpu_custom_call.1
$region0: #{tpu_custom_call.1}
  #allocation0 [shape = 'u32[]', space=smem, size = 0x4, offset = 0x4, fixed_abs, tag = 'smem constant byte address 0x4 - core index']
  #allocation1 [shape = 'u32[144,128]{1,0:T(1,128)}', space=vmem, size = 0x12000, scoped, tag = 'internal scratch']
  %s0 = inlined_call_operand.hbm [shape: f32[1,128], index: 0, kind: input, shape index: {}]
  %s1 = inlined_call_operand.hbm [shape: f32[136,256], index: 1, kind: input, shape index: {}]
  %s2 = inlined_call_operand.hbm [shape: f32[1,256], index: 2, kind: output, shape index: {}]
  %s3 = sld [smem:[#allocation0]]
  $region26: #{tpu_custom_call.1} parent=0
    _
  %s5 = ssub.s32 1, %s3
  %s6 = scalar_select 0, %s5, %s3
  $region1: #{tpu_custom_call.1} parent=0
    #allocation2 [shape = 'u8[512]{0}', space=vmem, size = 0x400, scoped, tag = 'input window, operand 0, single buffered']
    #allocation3 [shape = 's32[1]{0}', space=sflag, size = 0x4, scoped, tag = 'scoped memory for tpu_custom_call.1']
    #allocation4 [shape = 's32[1]{0}', space=sflag, size = 0x4, scoped, tag = 'scoped memory for tpu_custom_call.1']
    #allocation5 [shape = 'u8[139264]{0}', space=vmem, size = 0x22000, scoped, tag = 'input window, operand 1, single buffered']
    #allocation6 [shape = 's32[1]{0}', space=sflag, size = 0x4, scoped, tag = 'scoped memory for tpu_custom_call.1']
    #allocation7 [shape = 'u8[1024]{0}', space=vmem, size = 0x400, scoped, tag = 'output window, operand 0, single buffered']
    %7 = vsyncpa [#allocation3], 0
    %8 = vsyncpa [#allocation6], 0
    %9 = vsyncpa [#allocation4], 0
    // Predicated region
    $region2: #{tpu_custom_call.1} parent=1 // pred_check
      _
    $region3: #{tpu_custom_call.1} parent=1 // pred_check_branch
      %11 = sbr.rel (0) target = $region5
    $region4: #{tpu_custom_call.1} parent=1 // pred_region
      %s13 = ssub.s32 16, 16
      %14 = vsyncadd [#allocation3], %s13
      %s16 = sshll.u32 [#allocation2], 4
      %s17 = int_to_ptr.vmem [resolvable:$true] %s16
      %19 = dma.hbm_to_vmem [thread:$0]  %s0, 16, %s17, [#allocation3]
    $region5: #{tpu_custom_call.1} parent=1 // pred_fallthru
      _
    // Predicated region
    $region6: #{tpu_custom_call.1} parent=1 // pred_check
      _
    $region7: #{tpu_custom_call.1} parent=1 // pred_check_branch
      %21 = sbr.rel (0) target = $region9
    $region8: #{tpu_custom_call.1} parent=1 // pred_region
      %s23 = ssub.s32 4352, 4352
      %24 = vsyncadd [#allocation6], %s23
      %s25 = sshll.u32 [#allocation5], 4
      %s26 = int_to_ptr.vmem [resolvable:$true] %s25
      %31 = dma.hbm_to_vmem [thread:$0]  %s1, 4352, %s26, [#allocation6], 256, 256, 16
    $region9: #{tpu_custom_call.1} parent=1 // pred_fallthru
      _
    // Predicated region
    $region10: #{tpu_custom_call.1} parent=1 // pred_check
      _
    $region11: #{tpu_custom_call.1} parent=1 // pred_check_branch
      %33 = sbr.rel (0) target = $region13
    $region12: #{tpu_custom_call.1} parent=1 // pred_region
      %34 = dma.done [#allocation3], 16
    $region13: #{tpu_custom_call.1} parent=1 // pred_fallthru
      _
    // Predicated region
    $region14: #{tpu_custom_call.1} parent=1 // pred_check
      _
    $region15: #{tpu_custom_call.1} parent=1 // pred_check_branch
      %36 = sbr.rel (0) target = $region17
    $region16: #{tpu_custom_call.1} parent=1 // pred_region
      %37 = dma.done [#allocation6], 4352
    $region17: #{tpu_custom_call.1} parent=1 // pred_fallthru
      _
    %v38 = vld [vmem:[#allocation5] sm:$0xff]
    %v39 = vld [vmem:[#allocation5 + $0x8] sm:$0xff]
    %v40 = vld [vmem:[#allocation5 + $0x10] sm:$0xff]
    %v41 = vld [vmem:[#allocation5 + $0x18] sm:$0xff]
    %v42 = vld [vmem:[#allocation5 + $0x20] sm:$0xff]
    %v43 = vld [vmem:[#allocation5 + $0x28] sm:$0xff]
    %v44 = vld [vmem:[#allocation5 + $0x30] sm:$0xff]
    %v45 = vld [vmem:[#allocation5 + $0x38] sm:$0xff]
    %v46 = vld [vmem:[#allocation5 + $0x40] sm:$0xff]
    %v47 = vld [vmem:[#allocation5 + $0x48] sm:$0xff]
    %v48 = vld [vmem:[#allocation5 + $0x50] sm:$0xff]
    %v49 = vld [vmem:[#allocation5 + $0x58] sm:$0xff]
    %v50 = vld [vmem:[#allocation5 + $0x60] sm:$0xff]
    %v51 = vld [vmem:[#allocation5 + $0x68] sm:$0xff]
    %v52 = vld [vmem:[#allocation5 + $0x70] sm:$0xff]
    %v53 = vld [vmem:[#allocation5 + $0x78] sm:$0xff]
    %v54 = vld [vmem:[#allocation5 + $0x80] sm:$0xff]
    %v55 = vld [vmem:[#allocation5 + $0x88] sm:$0xff]
    %v56 = vld [vmem:[#allocation5 + $0x90] sm:$0xff]
    %v57 = vld [vmem:[#allocation5 + $0x98] sm:$0xff]
    %v58 = vld [vmem:[#allocation5 + $0xa0] sm:$0xff]
    %v59 = vld [vmem:[#allocation5 + $0xa8] sm:$0xff]
    %v60 = vld [vmem:[#allocation5 + $0xb0] sm:$0xff]
    %v61 = vld [vmem:[#allocation5 + $0xb8] sm:$0xff]
    %v62 = vld [vmem:[#allocation5 + $0xc0] sm:$0xff]
    %v63 = vld [vmem:[#allocation5 + $0xc8] sm:$0xff]
    %v64 = vld [vmem:[#allocation5 + $0xd0] sm:$0xff]
    %v65 = vld [vmem:[#allocation5 + $0xd8] sm:$0xff]
    %v66 = vld [vmem:[#allocation5 + $0xe0] sm:$0xff]
    %v67 = vld [vmem:[#allocation5 + $0xe8] sm:$0xff]
    %v68 = vld [vmem:[#allocation5 + $0xf0] sm:$0xff]
    %v69 = vld [vmem:[#allocation5 + $0xf8] sm:$0xff]
    %s70 = scalar_lea.vmem [#allocation5], 256
    %v71 = vld [vmem:[%s70] ss:$8 sm:$0x3]
    %v72 = vld [vmem:[#allocation2] sm:$0x1]
    %v74 = vlaneseq
    %v75 = vshrl.u32 %v74, 7
    %v76 = vsub.s32 0, %v75
    %v77 = vrot.slane %v71, %v76
    %v78 = vlaneseq
    %v79 = vshrl.u32 %v78, 7
    %v80 = vsub.s32 1, %v79
    %v81 = vrot.slane %v71, %v80
    %84 = vmatprep.subr.mxu0 %v39
    %85 = vmatpush1.msra.mxu0 %v38
    %86 = vmatprep.subr.mxu0 %v41
    %87 = vmatpush1.msra.mxu0 %v40
    %88 = vmatprep.subr.mxu0 %v43
    %89 = vmatpush1.msra.mxu0 %v42
    %90 = vmatprep.subr.mxu0 %v45
    %91 = vmatpush1.msra.mxu0 %v44
    %92 = vmatprep.subr.mxu0 %v47
    %93 = vmatpush1.msra.mxu0 %v46
    %94 = vmatprep.subr.mxu0 %v49
    %95 = vmatpush1.msra.mxu0 %v48
    %96 = vmatprep.subr.mxu0 %v51
    %97 = vmatpush1.msra.mxu0 %v50
    %98 = vmatprep.subr.mxu0 %v53
    %99 = vmatpush1.msra.mxu0 %v52
    %100 = vmatprep.subr.mxu0 %v55
    %101 = vmatpush1.msra.mxu0 %v54
    %102 = vmatprep.subr.mxu0 %v57
    %103 = vmatpush1.msra.mxu0 %v56
    %104 = vmatprep.subr.mxu0 %v59
    %105 = vmatpush1.msra.mxu0 %v58
    %106 = vmatprep.subr.mxu0 %v61
    %107 = vmatpush1.msra.mxu0 %v60
    %108 = vmatprep.subr.mxu0 %v63
    %109 = vmatpush1.msra.mxu0 %v62
    %110 = vmatprep.subr.mxu0 %v65
    %111 = vmatpush1.msra.mxu0 %v64
    %112 = vmatprep.subr.mxu0 %v67
    %113 = vmatpush1.msra.mxu0 %v66
    %114 = vmatprep.subr.mxu0 %v69
    %115 = vmatpush1.msra.mxu0 %v68
    %116 = vmatprep.subr.mxu0 0.0
    %117 = vmatpush1.msra.mxu0 0.0
    %118 = vmatprep.subr.mxu0 0.0
    %119 = vmatpush1.msra.mxu0 0.0
    %120 = vmatprep.subr.mxu0 0.0
    %121 = vmatpush1.msra.mxu0 0.0
    %122 = vmatprep.subr.mxu0 0.0
    %123 = vmatpush1.msra.mxu0 0.0
    %124 = vmatprep.subr.mxu0 0.0
    %125 = vmatpush1.msra.mxu0 0.0
    %126 = vmatprep.subr.mxu0 0.0
    %127 = vmatpush1.msra.mxu0 0.0
    %128 = vmatprep.subr.mxu0 0.0
    %129 = vmatpush1.msra.mxu0 0.0
    %130 = vmatprep.subr.mxu0 0.0
    %131 = vmatpush1.msra.mxu0 0.0
    %132 = vmatprep.subr.mxu0 0.0
    %133 = vmatpush1.msra.mxu0 0.0
    %134 = vmatprep.subr.mxu0 0.0
    %135 = vmatpush1.msra.mxu0 0.0
    %136 = vmatprep.subr.mxu0 0.0
    %137 = vmatpush1.msra.mxu0 0.0
    %138 = vmatprep.subr.mxu0 0.0
    %139 = vmatpush1.msra.mxu0 0.0
    %140 = vmatprep.subr.mxu0 0.0
    %141 = vmatpush1.msra.mxu0 0.0
    %142 = vmatprep.subr.mxu0 0.0
    %143 = vmatpush1.msra.mxu0 0.0
    %144 = vmatprep.subr.mxu0 0.0
    %145 = vmatpush1.msra.mxu0 0.0
    %146 = vmatprep.subr.mxu0 0.0
    %147 = vmatpush1.msra.mxu0 0.0
    %148 = vmatprep.mubr.f32.mxu0 0.0
    %149 = vmatmul.mubr.f32.gmra.mrb[0].mxu0 %v72
    %v150 = vpop.f32.mrb[0].mxu0
    %v151 = vadd.f32 %v77, %v150
    %v152 = vpop.f32.mrb[0].mxu0
    %v153 = vadd.f32 %v81, %v152
    %154 = vdwg.mxu0
    %v157 = vcombine.low %v151, %v153
    %v159 = vunpack.c.l.s4 1966171168
    %v160 = vunpack.c.0.s8 %v159
    %v161 = vlaneseq
    %v162 = vshrl.u32 %v161, 7
    %v163 = vsub.s32 %v160, %v162
    %v164 = vrot.slane %v157, %v163
    %v166 = vunpack.c.l.s4 1966171168
    %v167 = vunpack.c.0.s8 %v166
    %v168 = vlaneseq
    %v169 = vshrl.u32 %v168, 7
    %v170 = vsub.s32 %v167, %v169
    %v171 = vrot.slane %v164, %v170
    %v173 = vlaneseq
    %vm174 = vcmp.ge.s32.totalorder %v173, 0
    %vm175 = vcmp.lt.s32.totalorder %v173, 256
    %vm176 = vmand %vm174, %vm175
    %177 = vst.msk [vmem:[#allocation7] sm:$0x3] %vm176, %v171
    // Predicated region
    $region18: #{tpu_custom_call.1} parent=1 // pred_check
      _
    $region19: #{tpu_custom_call.1} parent=1 // pred_check_branch
      %179 = sbr.rel (0) target = $region21
    $region20: #{tpu_custom_call.1} parent=1 // pred_region
      %s181 = ssub.s32 32, 32
      %182 = vsyncadd [#allocation4], %s181
      %s184 = sshll.u32 [#allocation7], 4
      %s185 = int_to_ptr.vmem [resolvable:$true] %s184
      %187 = dma.vmem_to_hbm [thread:$0]  %s185, 32, %s2, [#allocation4]
    $region21: #{tpu_custom_call.1} parent=1 // pred_fallthru
      _
    // Predicated region
    $region22: #{tpu_custom_call.1} parent=1 // pred_check
      _
    $region23: #{tpu_custom_call.1} parent=1 // pred_check_branch
      %189 = sbr.rel (0) target = $region25
    $region24: #{tpu_custom_call.1} parent=1 // pred_region
      %190 = dma.done [#allocation4], 32
    $region25: #{tpu_custom_call.1} parent=1 // pred_fallthru
      _
    %191 = vsyncpa [#allocation3], 1
    %192 = vsyncpa [#allocation6], 1
    %193 = vsyncpa [#allocation4], 1

</llo_original>
